<compile_context>
chip_gen: v5e
topology: v5e:2x2
jax: 0.10.0
libtpu: 0.0.40
codegen_flags: <defaults>
</compile_context>

<pallas_src>
import functools

import jax
import jax.numpy as jnp
from jax.experimental import pallas as pl
from jax.experimental.pallas import tpu as pltpu


def _edm_partial_kernel(tri_ref, t_ref, e_ref, out_ref, *, n_rows, tile):
    i = pl.program_id(0)
    # Upcast after load (v5e VPU has no bf16 math); no-op for f32 inputs.
    d = e_ref[...].astype(jnp.float32) - t_ref[...].astype(jnp.float32)
    # Mask rows past the true batch size (only the edge tile has any; the
    # compare+select is negligible VPU work under the HBM roofline).
    row = jax.lax.broadcasted_iota(jnp.int32, d.shape, 0)
    d = jnp.where(i * tile + row < n_rows, d, jnp.zeros_like(d))
    # Inclusive cumsum over the bin axis via upper-triangular ones matmul.
    cdf = jnp.dot(d, tri_ref[...],
                  preferred_element_type=jnp.float32,
                  precision=jax.lax.Precision.HIGHEST)
    # One partial sum of squared CDF differences per grid step.
    ssq = jnp.sum(cdf * cdf)
    out_ref[...] = jnp.full(out_ref.shape, ssq, dtype=out_ref.dtype)


def _round_up(x, m):
    return (x + m - 1) // m * m


@functools.partial(jax.jit, static_argnames=("tile_n",))
def edm_loss(p_target, p_estimate, *, tile_n=4096):
    assert p_target.shape == p_estimate.shape and p_target.ndim == 2
    n, c = p_target.shape

    # Batch tile: sublane-aligned (multiple of 8) unless a single block covers
    # the whole batch (block dim == full array dim is always legal).
    tile = max(8, (tile_n // 8) * 8)
    if tile >= n:
        tile = n
    num_tiles = pl.cdiv(n, tile)

    # Upper-triangular ones matrix, hoisted out of the kernel, VMEM-resident:
    # (d @ tri)[r, j] == cumsum(d, axis=1)[r, j].
    tri = jnp.triu(jnp.ones((c, c), jnp.float32))

    # VMEM budget: inputs lane-pad C up to 128 inside VMEM (f32 upper bound);
    # 2 inputs x 2 pipeline buffers + ~4 tile-sized f32 temporaries + slack.
    c_pad = _round_up(c, 128)
    buf_bytes = tile * c_pad * 4
    vmem_limit = 2 * 2 * buf_bytes + 4 * buf_bytes + (2 << 20)
    vmem_limit = max(min(vmem_limit, 56 << 20), 32 << 20)  # <= v7x 64 MiB/TC

    kernel = functools.partial(_edm_partial_kernel, n_rows=n, tile=tile)

    partials = pl.pallas_call(
        kernel,
        out_shape=jax.ShapeDtypeStruct((num_tiles, 1, 1), jnp.float32),
        grid_spec=pltpu.PrefetchScalarGridSpec(
            num_scalar_prefetch=0,
            grid=(num_tiles,),
            in_specs=[
                pl.BlockSpec((c, c), lambda i: (0, 0)),      # tri (resident)
                pl.BlockSpec((tile, c), lambda i: (i, 0)),   # target tile
                pl.BlockSpec((tile, c), lambda i: (i, 0)),   # estimate tile
            ],
            out_specs=pl.BlockSpec((1, 1, 1), lambda i: (i, 0, 0)),
        ),
        compiler_params=pltpu.CompilerParams(
            dimension_semantics=("parallel",),
            vmem_limit_bytes=vmem_limit),
    )(tri, p_target, p_estimate)

    # sqrt(mean over all N*C squared CDF differences); n*c is a static const.
    return jnp.sqrt(jnp.sum(partials) / jnp.float32(n * c))


def edm_loss_ref(p_target, p_estimate):
    cdf_t = jnp.cumsum(p_target.astype(jnp.float32), axis=1)
    cdf_e = jnp.cumsum(p_estimate.astype(jnp.float32), axis=1)
    diff = cdf_e - cdf_t
    return jnp.sqrt(jnp.mean(jnp.abs(diff) ** 2))


if __name__ == "__main__":
    key = jax.random.PRNGKey(0)
    k1, k2, k3, k4 = jax.random.split(key, 4)

    # Test 1: small NIMA-like shape (batch=16, 10 score bins), single tile.
    N, C = 16, 10
    p_t = jax.nn.softmax(jax.random.normal(k1, (N, C), jnp.float32), axis=1)
    p_e = jax.nn.softmax(jax.random.normal(k2, (N, C), jnp.float32), axis=1)
    loss = jax.block_until_ready(edm_loss(p_t, p_e))
    ref = jax.block_until_ready(edm_loss_ref(p_t, p_e))
    assert jnp.allclose(loss, ref, rtol=1e-5, atol=1e-6), (loss, ref)

    # Test 2: batch not a multiple of the tile -> multi-step grid; exercises
    # the in-kernel edge-tile masking and the parallel per-tile partial sums.
    N2, C2 = 300, 16
    p_t2 = jax.nn.softmax(jax.random.normal(k3, (N2, C2), jnp.float32), axis=1)
    p_e2 = jax.nn.softmax(jax.random.normal(k4, (N2, C2), jnp.float32), axis=1)
    loss2 = jax.block_until_ready(edm_loss(p_t2, p_e2, tile_n=128))
    ref2 = jax.block_until_ready(edm_loss_ref(p_t2, p_e2))
    assert jnp.allclose(loss2, ref2, rtol=1e-5, atol=1e-6), (loss2, ref2)

    print("KERNEL_OK")
</pallas_src>

<mosaic_0001>
module attributes {stable_mosaic.version = 11 : i64} {
  func.func @_edm_partial_kernel(%arg0: i32, %arg1: memref<10x10xf32, #tpu.memory_space<vmem>>, %arg2: memref<16x10xf32, #tpu.memory_space<vmem>>, %arg3: memref<16x10xf32, #tpu.memory_space<vmem>>, %arg4: memref<1x1x1xf32, #tpu.memory_space<vmem>>) attributes {dimension_semantics = [#tpu.dimension_semantics<parallel>], iteration_bounds = array<i64: 1>, scalar_prefetch = 0 : i64, scratch_operands = 0 : i64, tpu.core_type = #tpu.core_type<tc>, window_params = [{pipeline_mode = #tpu.pipeline_mode<synchronous>, transform_indices = @transform_0, window_bounds = array<i64: 10, 10>}, {transform_indices = @transform_1, window_bounds = array<i64: 16, 10>}, {transform_indices = @transform_2, window_bounds = array<i64: 16, 10>}, {transform_indices = @transform_3, window_bounds = array<i64: 1, 1, 1>}]} {
    %c0 = arith.constant 0 : index
    %c0_0 = arith.constant 0 : index
    %0 = vector.load %arg3[%c0, %c0_0] : memref<16x10xf32, #tpu.memory_space<vmem>>, vector<16x10xf32>
    %c0_1 = arith.constant 0 : index
    %c0_2 = arith.constant 0 : index
    %1 = vector.load %arg2[%c0_1, %c0_2] : memref<16x10xf32, #tpu.memory_space<vmem>>, vector<16x10xf32>
    %2 = arith.subf %0, %1 : vector<16x10xf32>
    %3 = tpu.iota {dimensions = array<i32: 0>} : vector<16x10xi32>
    %c16_i32 = arith.constant 16 : i32
    %4 = arith.muli %arg0, %c16_i32 : i32
    %5 = vector.broadcast %4 : i32 to vector<16x10xi32>
    %6 = arith.addi %5, %3 : vector<16x10xi32>
    %c16_i32_3 = arith.constant 16 : i32
    %7 = vector.broadcast %c16_i32_3 : i32 to vector<16x10xi32>
    %8 = arith.cmpi slt, %6, %7 : vector<16x10xi32>
    %cst = arith.constant 0.000000e+00 : f32
    %9 = vector.broadcast %cst : f32 to vector<16x10xf32>
    %10 = arith.select %8, %2, %9 : vector<16x10xi1>, vector<16x10xf32>
    %c0_4 = arith.constant 0 : index
    %c0_5 = arith.constant 0 : index
    %11 = vector.load %arg1[%c0_4, %c0_5] : memref<10x10xf32, #tpu.memory_space<vmem>>, vector<10x10xf32>
    %cst_6 = arith.constant dense<0.000000e+00> : vector<16x10xf32>
    %12 = tpu.matmul %10, %11, %cst_6 {dimension_numbers = #tpu.dot_dimension_numbers<[1], [0], [0], [1], [0, 0, 1, 1], [], []>, precision = #tpu.contract_precision<fp32>} : vector<16x10xf32>, vector<10x10xf32>, vector<16x10xf32> -> vector<16x10xf32>
    %13 = arith.mulf %12, %12 : vector<16x10xf32>
    %14 = vector.shape_cast %13 : vector<16x10xf32> to vector<1x16x10xf32>
    %cst_7 = arith.constant dense<0.000000e+00> : vector<1xf32>
    %15 = vector.multi_reduction <add>, %14, %cst_7 [1, 2] : vector<1x16x10xf32> to vector<1xf32>
    %16 = vector.shape_cast %15 : vector<1xf32> to vector<1x1x1xf32>
    %17 = vector.extract %16[0, 0, 0] : f32 from vector<1x1x1xf32>
    %18 = vector.broadcast %17 : f32 to vector<1x1x1xf32>
    %c0_8 = arith.constant 0 : index
    %c0_9 = arith.constant 0 : index
    %c0_10 = arith.constant 0 : index
    %19 = vector.load %arg4[%c0_8, %c0_9, %c0_10] : memref<1x1x1xf32, #tpu.memory_space<vmem>>, vector<1x1x1xf32>
    tpu.vector_store %arg4[%c0_8, %c0_9, %c0_10], %18 {strides = array<i32>} : memref<1x1x1xf32, #tpu.memory_space<vmem>>, vector<1x1x1xf32>,
    return
  }
  func.func @transform_0(%arg0: i32) -> (i32, i32) {
    %c0_i32 = arith.constant 0 : i32
    %c0_i32_0 = arith.constant 0 : i32
    %c0_i32_1 = arith.constant 0 : i32
    return %c0_i32, %c0_i32_0 : i32, i32
  }
  func.func @transform_1(%arg0: i32) -> (i32, i32) {
    %c0_i32 = arith.constant 0 : i32
    %c0_i32_0 = arith.constant 0 : i32
    return %arg0, %c0_i32 : i32, i32
  }
  func.func @transform_2(%arg0: i32) -> (i32, i32) {
    %c0_i32 = arith.constant 0 : i32
    %c0_i32_0 = arith.constant 0 : i32
    return %arg0, %c0_i32 : i32, i32
  }
  func.func @transform_3(%arg0: i32) -> (i32, i32, i32) {
    %c0_i32 = arith.constant 0 : i32
    %c0_i32_0 = arith.constant 0 : i32
    %c0_i32_1 = arith.constant 0 : i32
    return %arg0, %c0_i32, %c0_i32_0 : i32, i32, i32
  }
}

</mosaic_0001>

<llo_original>
// kernel: edm_loss.1
$region0: #{edm_loss.1}
  #allocation0 [shape = 'u32[]', space=smem, size = 0x4, offset = 0x4, fixed_abs, tag = 'smem constant byte address 0x4 - core index']
  #allocation1 [shape = 'u32[72,128]{1,0:T(1,128)}', space=vmem, size = 0x9000, scoped, tag = 'internal scratch']
  %s0 = inlined_call_operand.vmem [shape: f32[10,10], index: 0, kind: input, shape index: {}]
  %s1 = inlined_call_operand.vmem [shape: f32[16,10], index: 1, kind: input, shape index: {}]
  %s2 = inlined_call_operand.hbm [shape: f32[16,10], index: 2, kind: input, shape index: {}]
  %s3 = inlined_call_operand.hbm [shape: f32[1,1,1], index: 3, kind: output, shape index: {}]
  %s4 = sld [smem:[#allocation0]]
  $region26: #{edm_loss.1} parent=0
    _
  %s6 = ssub.s32 1, %s4
  %s7 = scalar_select 0, %s6, %s4
  $region1: #{edm_loss.1} parent=0
    #allocation2 [shape = 'u8[8192]{0}', space=vmem, size = 0x2000, scoped, tag = 'input window, operand 2, single buffered']
    #allocation3 [shape = 's32[1]{0}', space=sflag, size = 0x4, scoped, tag = 'scoped memory for edm_loss.1']
    #allocation4 [shape = 's32[1]{0}', space=sflag, size = 0x4, scoped, tag = 'scoped memory for edm_loss.1']
    #allocation5 [shape = 'u8[512]{0}', space=vmem, size = 0x400, scoped, tag = 'output window, operand 0, single buffered']
    %8 = vsyncpa [#allocation3], 0
    %9 = vsyncpa [#allocation4], 0
    // Predicated region
    $region2: #{edm_loss.1} parent=1 // pred_check
      _
    $region3: #{edm_loss.1} parent=1 // pred_check_branch
      %11 = sbr.rel (0) target = $region5
    $region4: #{edm_loss.1} parent=1 // pred_region
      _
    $region5: #{edm_loss.1} parent=1 // pred_fallthru
      _
    // Predicated region
    $region6: #{edm_loss.1} parent=1 // pred_check
      _
    $region7: #{edm_loss.1} parent=1 // pred_check_branch
      %13 = sbr.rel (0) target = $region9
    $region8: #{edm_loss.1} parent=1 // pred_region
      _
    $region9: #{edm_loss.1} parent=1 // pred_fallthru
      _
    // Predicated region
    $region10: #{edm_loss.1} parent=1 // pred_check
      _
    $region11: #{edm_loss.1} parent=1 // pred_check_branch
      %15 = sbr.rel (0) target = $region13
    $region12: #{edm_loss.1} parent=1 // pred_region
      %17 = vsyncadd [#allocation3], 0
      %s18 = sshll.u32 %s2, 4
      %s19 = int_to_ptr.hbm [resolvable:$true] %s18
      %s20 = sshll.u32 [#allocation2], 4
      %s21 = int_to_ptr.vmem [resolvable:$true] %s20
      %26 = dma.hbm_to_vmem [thread:$0]  %s19, 256, %s21, [#allocation3], 128, 128, 8
    $region13: #{edm_loss.1} parent=1 // pred_fallthru
      _
    // Predicated region
    $region14: #{edm_loss.1} parent=1 // pred_check
      _
    $region15: #{edm_loss.1} parent=1 // pred_check_branch
      %28 = sbr.rel (0) target = $region17
    $region16: #{edm_loss.1} parent=1 // pred_region
      %30 = dma.done [#allocation3], 256
    $region17: #{edm_loss.1} parent=1 // pred_fallthru
      _
    %v31 = vld [vmem:[#allocation2] sm:$0xff]
    %v32 = vld [vmem:[#allocation2 + $0x8] sm:$0xff]
    %v33 = vld [vmem:[%s1] sm:$0xff]
    %v34 = vld [vmem:[%s1 + $0x8] sm:$0xff]
    %v35 = vsub.f32 %v31, %v33
    %v36 = vsub.f32 %v32, %v34
    %v37 = vlaneseq
    %v38 = vshrl.u32 %v37, 7
    %v39 = vadd.s32 %v38, 8
    %s40 = smul.u32 0, 16
    %v41 = vstv %s40
    %v42 = vadd.s32 %v41, %v38
    %v43 = vadd.s32 %v41, %v39
    %vm44 = vcmp.lt.s32.totalorder %v42, 16
    %vm45 = vcmp.lt.s32.totalorder %v43, 16
    %v46 = vsel %vm44, %v35, 0.0
    %v47 = vsel %vm45, %v36, 0.0
    %v48 = vld [vmem:[%s0] sm:$0xff]
    %v49 = vld [vmem:[%s0 + $0x8] sm:$0x3]
    %vm50 = vcmask 80896
    %v52 = vsel %vm50, %v46, 0
    %v55 = vsel %vm50, %v47, 0
    %vm57 = vcmask 1041408
    %v59 = vsel %vm57, %v49, 0
    %61 = vmatpush.msra.mxu0 0.0
    %62 = vmatpush.msra.mxu0 0.0
    %63 = vmatpush.msra.mxu0 0.0
    %64 = vmatpush.msra.mxu0 0.0
    %65 = vmatpush.msra.mxu0 0.0
    %66 = vmatpush.msra.mxu0 0.0
    %67 = vmatpush.msra.mxu0 0.0
    %68 = vmatpush.msra.mxu0 0.0
    %69 = vmatpush.msra.mxu0 0.0
    %70 = vmatpush.msra.mxu0 0.0
    %71 = vmatpush.msra.mxu0 0.0
    %72 = vmatpush.msra.mxu0 0.0
    %73 = vmatpush.msra.mxu0 0.0
    %74 = vmatpush.msra.mxu0 0.0
    %v75 = vand.u32 %v59, 4294901760
    %76 = vmatpush.msra.mxu0 %v75
    %v77 = vand.u32 %v48, 4294901760
    %78 = vmatpush.msra.mxu0 %v77
    %v79 = vand.u32 %v52, 4294901760
    %v80 = vsub.f32 %v52, %v79
    %v81 = vand.u32 %v80, 4294901760
    %v82 = vsub.f32 %v80, %v81
    %v83 = vand.u32 %v82, 4294901760
    %84 = vmatmul.f32.gmra.mxu0 %v83
    %v85 = vpop.f32.mrf.mxu0
    %v86 = vadd.f32 0.0, %v85
    %v87 = vand.u32 %v55, 4294901760
    %v88 = vsub.f32 %v55, %v87
    %v89 = vand.u32 %v88, 4294901760
    %v90 = vsub.f32 %v88, %v89
    %v91 = vand.u32 %v90, 4294901760
    %92 = vmatmul.f32.gmra.mxu0 %v91
    %v93 = vpop.f32.mrf.mxu0
    %v94 = vadd.f32 0.0, %v93
    %95 = vdwg.mxu0
    %96 = vmatpush.msra.mxu0 0.0
    %97 = vmatpush.msra.mxu0 0.0
    %98 = vmatpush.msra.mxu0 0.0
    %99 = vmatpush.msra.mxu0 0.0
    %100 = vmatpush.msra.mxu0 0.0
    %101 = vmatpush.msra.mxu0 0.0
    %102 = vmatpush.msra.mxu0 0.0
    %103 = vmatpush.msra.mxu0 0.0
    %104 = vmatpush.msra.mxu0 0.0
    %105 = vmatpush.msra.mxu0 0.0
    %106 = vmatpush.msra.mxu0 0.0
    %107 = vmatpush.msra.mxu0 0.0
    %108 = vmatpush.msra.mxu0 0.0
    %109 = vmatpush.msra.mxu0 0.0
    %v110 = vand.u32 %v59, 4294901760
    %v111 = vsub.f32 %v59, %v110
    %v112 = vand.u32 %v111, 4294901760
    %v113 = vsub.f32 %v111, %v112
    %v114 = vand.u32 %v113, 4294901760
    %115 = vmatpush.msra.mxu0 %v114
    %v116 = vand.u32 %v48, 4294901760
    %v117 = vsub.f32 %v48, %v116
    %v118 = vand.u32 %v117, 4294901760
    %v119 = vsub.f32 %v117, %v118
    %v120 = vand.u32 %v119, 4294901760
    %121 = vmatpush.msra.mxu0 %v120
    %v122 = vand.u32 %v52, 4294901760
    %123 = vmatmul.f32.gmra.mxu0 %v122
    %v124 = vpop.f32.mrf.mxu0
    %v125 = vadd.f32 %v86, %v124
    %v126 = vand.u32 %v55, 4294901760
    %127 = vmatmul.f32.gmra.mxu0 %v126
    %v128 = vpop.f32.mrf.mxu0
    %v129 = vadd.f32 %v94, %v128
    %130 = vdwg.mxu0
    %131 = vmatpush.msra.mxu0 0.0
    %132 = vmatpush.msra.mxu0 0.0
    %133 = vmatpush.msra.mxu0 0.0
    %134 = vmatpush.msra.mxu0 0.0
    %135 = vmatpush.msra.mxu0 0.0
    %136 = vmatpush.msra.mxu0 0.0
    %137 = vmatpush.msra.mxu0 0.0
    %138 = vmatpush.msra.mxu0 0.0
    %139 = vmatpush.msra.mxu0 0.0
    %140 = vmatpush.msra.mxu0 0.0
    %141 = vmatpush.msra.mxu0 0.0
    %142 = vmatpush.msra.mxu0 0.0
    %143 = vmatpush.msra.mxu0 0.0
    %144 = vmatpush.msra.mxu0 0.0
    %v145 = vand.u32 %v59, 4294901760
    %v146 = vsub.f32 %v59, %v145
    %147 = vmatpush.msra.mxu0 %v146
    %v148 = vand.u32 %v48, 4294901760
    %v149 = vsub.f32 %v48, %v148
    %150 = vmatpush.msra.mxu0 %v149
    %v151 = vand.u32 %v52, 4294901760
    %v152 = vsub.f32 %v52, %v151
    %153 = vmatmul.f32.gmra.mxu0 %v152
    %v154 = vpop.f32.mrf.mxu0
    %v155 = vadd.f32 %v125, %v154
    %v156 = vand.u32 %v55, 4294901760
    %v157 = vsub.f32 %v55, %v156
    %158 = vmatmul.f32.gmra.mxu0 %v157
    %v159 = vpop.f32.mrf.mxu0
    %v160 = vadd.f32 %v129, %v159
    %161 = vdwg.mxu0
    %162 = vmatpush.msra.mxu0 0.0
    %163 = vmatpush.msra.mxu0 0.0
    %164 = vmatpush.msra.mxu0 0.0
    %165 = vmatpush.msra.mxu0 0.0
    %166 = vmatpush.msra.mxu0 0.0
    %167 = vmatpush.msra.mxu0 0.0
    %168 = vmatpush.msra.mxu0 0.0
    %169 = vmatpush.msra.mxu0 0.0
    %170 = vmatpush.msra.mxu0 0.0
    %171 = vmatpush.msra.mxu0 0.0
    %172 = vmatpush.msra.mxu0 0.0
    %173 = vmatpush.msra.mxu0 0.0
    %174 = vmatpush.msra.mxu0 0.0
    %175 = vmatpush.msra.mxu0 0.0
    %v176 = vand.u32 %v59, 4294901760
    %177 = vmatpush.msra.mxu0 %v176
    %v178 = vand.u32 %v48, 4294901760
    %179 = vmatpush.msra.mxu0 %v178
    %v180 = vand.u32 %v52, 4294901760
    %v181 = vsub.f32 %v52, %v180
    %v182 = vand.u32 %v181, 4294901760
    %183 = vmatmul.f32.gmra.mxu0 %v182
    %v184 = vpop.f32.mrf.mxu0
    %v185 = vadd.f32 %v155, %v184
    %v186 = vand.u32 %v55, 4294901760
    %v187 = vsub.f32 %v55, %v186
    %v188 = vand.u32 %v187, 4294901760
    %189 = vmatmul.f32.gmra.mxu0 %v188
    %v190 = vpop.f32.mrf.mxu0
    %v191 = vadd.f32 %v160, %v190
    %192 = vdwg.mxu0
    %193 = vmatpush.msra.mxu0 0.0
    %194 = vmatpush.msra.mxu0 0.0
    %195 = vmatpush.msra.mxu0 0.0
    %196 = vmatpush.msra.mxu0 0.0
    %197 = vmatpush.msra.mxu0 0.0
    %198 = vmatpush.msra.mxu0 0.0
    %199 = vmatpush.msra.mxu0 0.0
    %200 = vmatpush.msra.mxu0 0.0
    %201 = vmatpush.msra.mxu0 0.0
    %202 = vmatpush.msra.mxu0 0.0
    %203 = vmatpush.msra.mxu0 0.0
    %204 = vmatpush.msra.mxu0 0.0
    %205 = vmatpush.msra.mxu0 0.0
    %206 = vmatpush.msra.mxu0 0.0
    %v207 = vand.u32 %v59, 4294901760
    %v208 = vsub.f32 %v59, %v207
    %v209 = vand.u32 %v208, 4294901760
    %210 = vmatpush.msra.mxu0 %v209
    %v211 = vand.u32 %v48, 4294901760
    %v212 = vsub.f32 %v48, %v211
    %v213 = vand.u32 %v212, 4294901760
    %214 = vmatpush.msra.mxu0 %v213
    %v215 = vand.u32 %v52, 4294901760
    %216 = vmatmul.f32.gmra.mxu0 %v215
    %v217 = vpop.f32.mrf.mxu0
    %v218 = vadd.f32 %v185, %v217
    %v219 = vand.u32 %v55, 4294901760
    %220 = vmatmul.f32.gmra.mxu0 %v219
    %v221 = vpop.f32.mrf.mxu0
    %v222 = vadd.f32 %v191, %v221
    %223 = vdwg.mxu0
    %224 = vmatpush.msra.mxu0 0.0
    %225 = vmatpush.msra.mxu0 0.0
    %226 = vmatpush.msra.mxu0 0.0
    %227 = vmatpush.msra.mxu0 0.0
    %228 = vmatpush.msra.mxu0 0.0
    %229 = vmatpush.msra.mxu0 0.0
    %230 = vmatpush.msra.mxu0 0.0
    %231 = vmatpush.msra.mxu0 0.0
    %232 = vmatpush.msra.mxu0 0.0
    %233 = vmatpush.msra.mxu0 0.0
    %234 = vmatpush.msra.mxu0 0.0
    %235 = vmatpush.msra.mxu0 0.0
    %236 = vmatpush.msra.mxu0 0.0
    %237 = vmatpush.msra.mxu0 0.0
    %v238 = vand.u32 %v59, 4294901760
    %239 = vmatpush.msra.mxu0 %v238
    %v240 = vand.u32 %v48, 4294901760
    %241 = vmatpush.msra.mxu0 %v240
    %v242 = vand.u32 %v52, 4294901760
    %243 = vmatmul.f32.gmra.mxu0 %v242
    %v244 = vpop.f32.mrf.mxu0
    %v245 = vadd.f32 %v218, %v244
    %v246 = vand.u32 %v55, 4294901760
    %247 = vmatmul.f32.gmra.mxu0 %v246
    %v248 = vpop.f32.mrf.mxu0
    %v249 = vadd.f32 %v222, %v248
    %250 = vdwg.mxu0
    %v251 = vmul.f32 %v245, %v245
    %v252 = vmul.f32 %v249, %v249
    %v253 = vsel %vm50, %v251, 0.0
    %v254 = vsel %vm50, %v252, 0.0
    %v255 = vadd.f32 %v253, %v254
    %256 = vadd.xlane.f32.xlu0 %v255
    %v257 = vpop.xlane.xlu0 %256
    %v258 = vrot.slane %v257, 4
    %v259 = vadd.f32 %v257, %v258
    %v260 = vrot.slane %v259, 2
    %v261 = vadd.f32 %v259, %v260
    %v262 = vrot.slane %v261, 1
    %v263 = vadd.f32 %v261, %v262
    %s264 = vtos %v263
    %v265 = vstv %s264
    %vm266 = vcmask 0
    %267 = vst.msk [vmem:[#allocation5] sm:$0x1] %vm266, %v265
    // Predicated region
    $region18: #{edm_loss.1} parent=1 // pred_check
      _
    $region19: #{edm_loss.1} parent=1 // pred_check_branch
      %269 = sbr.rel (0) target = $region21
    $region20: #{edm_loss.1} parent=1 // pred_region
      %271 = vsyncadd [#allocation4], 0
      %s273 = sshll.u32 [#allocation5], 4
      %s274 = int_to_ptr.vmem [resolvable:$true] %s273
      %s275 = sshll.u32 %s3, 4
      %s276 = int_to_ptr.hbm [resolvable:$true] %s275
      %278 = dma.vmem_to_hbm [thread:$0]  %s274, 16, %s276, [#allocation4]
    $region21: #{edm_loss.1} parent=1 // pred_fallthru
      _
    // Predicated region
    $region22: #{edm_loss.1} parent=1 // pred_check
      _
    $region23: #{edm_loss.1} parent=1 // pred_check_branch
      %280 = sbr.rel (0) target = $region25
    $region24: #{edm_loss.1} parent=1 // pred_region
      %282 = dma.done [#allocation4], 16
    $region25: #{edm_loss.1} parent=1 // pred_fallthru
      _
    %283 = vsyncpa [#allocation3], 1
    %284 = vsyncpa [#allocation4], 1

</llo_original>
